<compile_context>
chip_gen: v6e
topology: v6e:2x2x1
jax: 0.10.0
libtpu: 0.0.40
codegen_flags: <defaults>
</compile_context>

<pallas_src>
import functools

import jax
import jax.numpy as jnp
from jax import lax
from jax.experimental import pallas as pl
from jax.experimental.pallas import tpu as pltpu

LANE = 128
MAX_TILE_N = 512                     # output-row tile for the aggregation matmul
MAX_TILE_K = 2048                    # reduction (neighbor-column) tile
XL_RESIDENT_BUDGET = 40 * 1024 * 1024   # agg-kernel VMEM budget that still allows XL residency
VMEM_LIMIT_CAP = 48 * 1024 * 1024       # safe scoped-VMEM cap on v5e/v6e (128 MiB) and v7x (64 MiB)


def _round_up(x, m):
    return (x + m - 1) // m * m


def _pad2d(a, rows, cols):
    r, c = a.shape
    return jnp.pad(a, ((0, rows - r), (0, cols - c)))


def _choose_tile(total, max_tile, min_blocks=1, unit=128):
    """Largest multiple of `unit` dividing `total`, <= max_tile, leaving >= min_blocks blocks."""
    best = unit
    t = unit
    while t <= min(max_tile, total):
        if total % t == 0 and total // t >= min_blocks:
            best = t
        t += unit
    return best


# --------------------------------------------------------------------------------------
# Kernel 1: row-tiled dual projection  XL = X @ Wl,  XRb = X @ Wr + b   (shared X load)
# --------------------------------------------------------------------------------------
def linear_pair_kernel(x_ref, wl_ref, wr_ref, b_ref, ol_ref, or_ref):
    x = x_ref[...]
    ol_ref[...] = jnp.dot(x, wl_ref[...],
                          preferred_element_type=jnp.float32).astype(ol_ref.dtype)
    xr = jnp.dot(x, wr_ref[...], preferred_element_type=jnp.float32) + b_ref[...]
    or_ref[...] = xr.astype(or_ref.dtype)


def linear_pair(x, wl, wr, bias, *, tile_r):
    """x: (Np, Fp) bf16; wl/wr: (Fp, Hp) bf16; bias: (1, Hp) f32 -> (XL, XR+b), both bf16."""
    Np, Fp = x.shape
    Hp = wl.shape[1]
    need = (2 * tile_r * Fp * 2 + 2 * 2 * Fp * Hp * 2 + 2 * Hp * 4
            + 2 * 2 * tile_r * Hp * 2)
    return pl.pallas_call(
        linear_pair_kernel,
        out_shape=(jax.ShapeDtypeStruct((Np, Hp), jnp.bfloat16),
                   jax.ShapeDtypeStruct((Np, Hp), jnp.bfloat16)),
        grid_spec=pltpu.PrefetchScalarGridSpec(
            num_scalar_prefetch=0,
            grid=(Np // tile_r,),
            in_specs=[
                pl.BlockSpec((tile_r, Fp), lambda i: (i, 0)),
                pl.BlockSpec((Fp, Hp), lambda i: (0, 0)),
                pl.BlockSpec((Fp, Hp), lambda i: (0, 0)),
                pl.BlockSpec((1, Hp), lambda i: (0, 0)),
            ],
            out_specs=[
                pl.BlockSpec((tile_r, Hp), lambda i: (i, 0)),
                pl.BlockSpec((tile_r, Hp), lambda i: (i, 0)),
            ],
        ),
        compiler_params=pltpu.CompilerParams(
            dimension_semantics=("parallel",),
            vmem_limit_bytes=min(max(need + (4 << 20), 16 << 20), VMEM_LIMIT_CAP)),
        cost_estimate=pl.CostEstimate(
            flops=4 * Np * Fp * Hp,
            transcendentals=0,
            bytes_accessed=Np * Fp * 2 + 2 * Fp * Hp * 2 + Hp * 4 + 2 * Np * Hp * 2),
    )(x, wl, wr, bias)


# --------------------------------------------------------------------------------------
# Kernel 2: SAGE mean-aggregation + combine + L2 normalize (+ fused ReLU/BN transition)
#   out[i] = normalize( (sum_k counts[i, k] @ XL[k]) * inv_deg[i] + XRb[i] ) [relu, *s+t]
# --------------------------------------------------------------------------------------
def sage_agg_kernel(a_ref, xl_ref, xr_ref, inv_ref, s_ref, t_ref, o_ref, acc_ref, *,
                    tile_k, xl_resident, apply_transition):
    k = pl.program_id(1)

    @pl.when(k == 0)
    def _():
        acc_ref[...] = jnp.zeros_like(acc_ref)

    if xl_resident:
        start = pl.multiple_of(k * tile_k, tile_k)
        xl = xl_ref[pl.ds(start, tile_k), :]       # XL fully resident; slice the k-chunk
    else:
        xl = xl_ref[...]                           # XL streamed per reduction tile
    acc_ref[...] += jnp.dot(a_ref[...], xl, preferred_element_type=jnp.float32)

    @pl.when(k == pl.num_programs(1) - 1)
    def _():
        # mean aggregation: scale the count-weighted sum by 1/deg (f32, exact)
        h = acc_ref[...] * inv_ref[...] + xr_ref[...].astype(jnp.float32)
        ssq = jnp.sum(h * h, axis=-1, keepdims=True)
        # == h / max(||h||_2, 1e-12)  (F.normalize p=2); rsqrt runs on the EUP slot
        h = h * lax.rsqrt(jnp.maximum(ssq, 1e-24))
        if apply_transition:
            h = jnp.maximum(h, 0.0)                # ReLU
            h = h * s_ref[...] + t_ref[...]        # BatchNorm1d (eval) folded to affine
        o_ref[...] = h.astype(o_ref.dtype)


def sage_agg(counts, xl, xrb, inv_deg, bn_scale, bn_shift, *,
             tile_n, tile_k, apply_transition, out_dtype):
    Np = counts.shape[0]
    Hp = xl.shape[1]
    out_bytes = jnp.dtype(out_dtype).itemsize

    def agg_vmem(resident):
        xl_b = 2 * Np * Hp * 2 if resident else 2 * tile_k * Hp * 2
        return (2 * tile_n * tile_k * 2        # A counts (bf16), double-buffered
                + xl_b                         # XL
                + 2 * tile_n * Hp * 2          # XR + bias
                + 2 * tile_n * 4               # 1/deg
                + 4 * Hp * 4                   # BN scale / shift
                + 2 * tile_n * Hp * out_bytes  # output
                + tile_n * Hp * 4)             # f32 accumulator scratch

    xl_resident = agg_vmem(True) <= XL_RESIDENT_BUDGET
    need = agg_vmem(xl_resident)

    if xl_resident:
        xl_spec = pl.BlockSpec((Np, Hp), lambda i, k: (0, 0))   # constant index -> one fetch
        xl_bytes = Np * Hp * 2
    else:
        xl_spec = pl.BlockSpec((tile_k, Hp), lambda i, k: (k, 0))
        xl_bytes = (Np // tile_n) * Np * Hp * 2                 # re-streamed once per row tile

    kernel = functools.partial(sage_agg_kernel, tile_k=tile_k,
                               xl_resident=xl_resident,
                               apply_transition=apply_transition)
    return pl.pallas_call(
        kernel,
        out_shape=jax.ShapeDtypeStruct((Np, Hp), out_dtype),
        grid_spec=pltpu.PrefetchScalarGridSpec(
            num_scalar_prefetch=0,
            grid=(Np // tile_n, Np // tile_k),
            in_specs=[
                pl.BlockSpec((tile_n, tile_k), lambda i, k: (i, k)),   # in-edge counts (bf16)
                xl_spec,                                               # XL (bf16)
                pl.BlockSpec((tile_n, Hp), lambda i, k: (i, 0)),       # XR + bias (bf16)
                pl.BlockSpec((tile_n, 1), lambda i, k: (i, 0)),        # 1/deg (f32)
                pl.BlockSpec((1, Hp), lambda i, k: (0, 0)),            # BN scale
                pl.BlockSpec((1, Hp), lambda i, k: (0, 0)),            # BN shift
            ],
            out_specs=pl.BlockSpec((tile_n, Hp), lambda i, k: (i, 0)),
            scratch_shapes=[pltpu.VMEM((tile_n, Hp), jnp.float32)],
        ),
        compiler_params=pltpu.CompilerParams(
            dimension_semantics=("parallel", "arbitrary"),
            vmem_limit_bytes=min(max(need + (4 << 20), 16 << 20), VMEM_LIMIT_CAP)),
        cost_estimate=pl.CostEstimate(
            flops=2 * Np * Np * Hp,
            transcendentals=Np,
            bytes_accessed=(Np * Np * 2 + xl_bytes + Np * Hp * 2
                            + Np * 4 + 2 * Hp * 4 + Np * Hp * out_bytes)),
    )(counts, xl, xrb, inv_deg, bn_scale, bn_shift)


# --------------------------------------------------------------------------------------
# Graph / parameter glue
# --------------------------------------------------------------------------------------
def build_adj_counts(edge_index, padded_nodes):
    """Unnormalized in-edge counts (bf16, exact for small integer counts) and per-row 1/deg
    (f32). counts[i, j] = #edges j->i; rows/cols for padded nodes stay zero. No self-loops
    (matches PyG SAGEConv)."""
    src, dst = edge_index[0], edge_index[1]
    counts = jnp.zeros((padded_nodes, padded_nodes), jnp.bfloat16)
    counts = counts.at[dst, src].add(jnp.ones_like(src, jnp.bfloat16))
    deg = jnp.zeros((padded_nodes,), jnp.float32).at[dst].add(1.0)
    inv_deg = jnp.where(deg > 0.0, 1.0 / jnp.maximum(deg, 1.0), 0.0).reshape(-1, 1)
    return counts, inv_deg


def glorot_uniform(key, fan_in, fan_out):
    limit = jnp.sqrt(6.0 / (fan_in + fan_out))
    return jax.random.uniform(key, (fan_in, fan_out), jnp.float32, -limit, limit)


class SAGEPallas:
    """SAGEConv(mean, normalize) -> ReLU/BatchNorm1d/Dropout -> SAGEConv(mean, normalize).
    Inference-mode forward (Dropout identity, BatchNorm1d uses running stats).
    Weights stored as (in, out) == torch (out, in)^T; xavier-uniform init; zero biases."""

    def __init__(self, key, nfeat, nhid, dropout=0.5):
        k1, k2, k3, k4 = jax.random.split(key, 4)
        self.nfeat, self.nhid = nfeat, nhid
        # conv1: lin_l (with bias) for aggregated neighbors, lin_r (no bias) for root
        self.wl1 = glorot_uniform(k1, nfeat, nhid)
        self.wr1 = glorot_uniform(k2, nfeat, nhid)
        self.bl1 = jnp.zeros((nhid,), jnp.float32)
        # conv2
        self.wl2 = glorot_uniform(k3, nhid, nhid)
        self.wr2 = glorot_uniform(k4, nhid, nhid)
        self.bl2 = jnp.zeros((nhid,), jnp.float32)
        # BatchNorm1d(nhid) parameters / running statistics (fresh defaults)
        self.bn_gamma = jnp.ones((nhid,), jnp.float32)
        self.bn_beta = jnp.zeros((nhid,), jnp.float32)
        self.bn_mean = jnp.zeros((nhid,), jnp.float32)
        self.bn_var = jnp.ones((nhid,), jnp.float32)
        self.bn_eps = 1e-5
        # TODO(synk): training-mode BatchNorm (batch stats) and stochastic Dropout not implemented.

    def forward(self, x, edge_index):
        N, F = x.shape
        H = self.nhid
        Np = _round_up(N, 256)          # pad rows to the row-tile unit only (not TILE_K)
        Fp = _round_up(F, LANE)
        Hp = _round_up(H, LANE)
        tile_n = _choose_tile(Np, MAX_TILE_N, min_blocks=2)  # >=2 row tiles -> both v7x TCs busy
        tile_k = _choose_tile(Np, MAX_TILE_K)

        counts, inv_deg = build_adj_counts(edge_index, Np)   # (Np, Np) bf16, (Np, 1) f32
        xp = _pad2d(x.astype(jnp.float32), Np, Fp).astype(jnp.bfloat16)

        def pad_vec(v):
            return _pad2d(v.reshape(1, -1).astype(jnp.float32), 1, Hp)

        def bf(w, r, c):
            return _pad2d(w, r, c).astype(jnp.bfloat16)

        s = self.bn_gamma / jnp.sqrt(self.bn_var + self.bn_eps)
        bn_scale = pad_vec(s)
        bn_shift = pad_vec(self.bn_beta - self.bn_mean * s)
        zeros_vec = jnp.zeros((1, Hp), jnp.float32)

        # ---- layer 1 (+ fused ReLU/BatchNorm transition; Dropout eval = identity) ----
        xl1, xr1 = linear_pair(xp, bf(self.wl1, Fp, Hp), bf(self.wr1, Fp, Hp),
                               pad_vec(self.bl1), tile_r=tile_n)
        h1 = sage_agg(counts, xl1, xr1, inv_deg, bn_scale, bn_shift,
                      tile_n=tile_n, tile_k=tile_k, apply_transition=True,
                      out_dtype=jnp.bfloat16)        # feeds the next MXU matmul

        # ---- layer 2 ----
        xl2, xr2 = linear_pair(h1, bf(self.wl2, Hp, Hp), bf(self.wr2, Hp, Hp),
                               pad_vec(self.bl2), tile_r=tile_n)
        h2 = sage_agg(counts, xl2, xr2, inv_deg, zeros_vec, zeros_vec,
                      tile_n=tile_n, tile_k=tile_k, apply_transition=False,
                      out_dtype=jnp.float32)

        return h2[:N, :H]


# --------------------------------------------------------------------------------------
# Pure-JAX reference (f32) for sanity checking
# --------------------------------------------------------------------------------------
def reference_sage(x, edge_index, m):
    N = x.shape[0]
    src, dst = edge_index[0], edge_index[1]
    counts = jnp.zeros((N, N), jnp.float32).at[dst, src].add(1.0)
    deg = counts.sum(axis=1, keepdims=True)
    A = jnp.where(deg > 0, counts / jnp.maximum(deg, 1.0), 0.0)

    def sage_conv(h, wl, wr, b):
        out = A @ h @ wl + b + h @ wr
        nrm = jnp.sqrt(jnp.sum(out * out, axis=-1, keepdims=True))
        return out / jnp.maximum(nrm, 1e-12)

    h = sage_conv(x, m.wl1, m.wr1, m.bl1)
    h = jnp.maximum(h, 0.0)
    s = m.bn_gamma / jnp.sqrt(m.bn_var + m.bn_eps)
    h = h * s + (m.bn_beta - m.bn_mean * s)
    h = sage_conv(h, m.wl2, m.wr2, m.bl2)
    return h


if __name__ == "__main__":
    key = jax.random.PRNGKey(0)
    k_x, k_e1, k_e2, k_p = jax.random.split(key, 4)

    N, F, H, E = 200, 32, 16, 800   # nodes, nfeat, nhid, edges

    x = jax.random.normal(k_x, (N, F), jnp.float32)
    src = jax.random.randint(k_e1, (E,), 0, N, dtype=jnp.int32)
    dst = jax.random.randint(k_e2, (E,), 0, N, dtype=jnp.int32)
    edge_index = jnp.stack([src, dst], axis=0)   # (2, E), like torch edge_index

    model = SAGEPallas(k_p, nfeat=F, nhid=H)
    out = model.forward(x, edge_index)
    out = jax.block_until_ready(out)
    assert out.shape == (N, H)

    ref = reference_sage(x, edge_index, model)
    # x / weights / XL / XR / counts / h1 are streamed in bf16 (f32 MXU accumulation, f32
    # 1/deg + normalize) -> loose-but-meaningful tolerance vs. the full-f32 reference.
    max_err = float(jnp.max(jnp.abs(out - ref)))
    assert jnp.allclose(out, ref, atol=4e-2, rtol=4e-2), max_err

    print("KERNEL_OK")
</pallas_src>

<mosaic_0001>
module attributes {stable_mosaic.version = 11 : i64} {
  func.func @linear_pair_kernel(%arg0: i32, %arg1: memref<128x128xbf16, #tpu.memory_space<vmem>>, %arg2: memref<128x128xbf16, #tpu.memory_space<vmem>>, %arg3: memref<128x128xbf16, #tpu.memory_space<vmem>>, %arg4: memref<1x128xf32, #tpu.memory_space<vmem>>, %arg5: memref<128x128xbf16, #tpu.memory_space<vmem>>, %arg6: memref<128x128xbf16, #tpu.memory_space<vmem>>) attributes {dimension_semantics = [#tpu.dimension_semantics<parallel>], iteration_bounds = array<i64: 2>, scalar_prefetch = 0 : i64, scratch_operands = 0 : i64, tpu.core_type = #tpu.core_type<tc>, window_params = [{transform_indices = @transform_0, window_bounds = array<i64: 128, 128>}, {pipeline_mode = #tpu.pipeline_mode<synchronous>, transform_indices = @transform_1, window_bounds = array<i64: 128, 128>}, {pipeline_mode = #tpu.pipeline_mode<synchronous>, transform_indices = @transform_2, window_bounds = array<i64: 128, 128>}, {pipeline_mode = #tpu.pipeline_mode<synchronous>, transform_indices = @transform_3, window_bounds = array<i64: 1, 128>}, {transform_indices = @transform_4, window_bounds = array<i64: 128, 128>}, {transform_indices = @transform_5, window_bounds = array<i64: 128, 128>}]} {
    %c0 = arith.constant 0 : index
    %c0_0 = arith.constant 0 : index
    %0 = vector.load %arg1[%c0, %c0_0] : memref<128x128xbf16, #tpu.memory_space<vmem>>, vector<128x128xbf16>
    %c0_1 = arith.constant 0 : index
    %c0_2 = arith.constant 0 : index
    %1 = vector.load %arg2[%c0_1, %c0_2] : memref<128x128xbf16, #tpu.memory_space<vmem>>, vector<128x128xbf16>
    %cst = arith.constant dense<0.000000e+00> : vector<128x128xf32>
    %2 = tpu.matmul %0, %1, %cst {dimension_numbers = #tpu.dot_dimension_numbers<[1], [0], [0], [1], [0, 0, 1, 1], [], []>} : vector<128x128xbf16>, vector<128x128xbf16>, vector<128x128xf32> -> vector<128x128xf32>
    %3 = arith.truncf %2 : vector<128x128xf32> to vector<128x128xbf16>
    %c0_3 = arith.constant 0 : index
    %c0_4 = arith.constant 0 : index
    %4 = vector.load %arg5[%c0_3, %c0_4] : memref<128x128xbf16, #tpu.memory_space<vmem>>, vector<128x128xbf16>
    tpu.vector_store %arg5[%c0_3, %c0_4], %3 {strides = array<i32>} : memref<128x128xbf16, #tpu.memory_space<vmem>>, vector<128x128xbf16>,
    %c0_5 = arith.constant 0 : index
    %c0_6 = arith.constant 0 : index
    %5 = vector.load %arg3[%c0_5, %c0_6] : memref<128x128xbf16, #tpu.memory_space<vmem>>, vector<128x128xbf16>
    %cst_7 = arith.constant dense<0.000000e+00> : vector<128x128xf32>
    %6 = tpu.matmul %0, %5, %cst_7 {dimension_numbers = #tpu.dot_dimension_numbers<[1], [0], [0], [1], [0, 0, 1, 1], [], []>} : vector<128x128xbf16>, vector<128x128xbf16>, vector<128x128xf32> -> vector<128x128xf32>
    %c0_8 = arith.constant 0 : index
    %c0_9 = arith.constant 0 : index
    %7 = vector.load %arg4[%c0_8, %c0_9] : memref<1x128xf32, #tpu.memory_space<vmem>>, vector<1x128xf32>
    %8 = vector.broadcast %7 : vector<1x128xf32> to vector<128x128xf32>
    %9 = arith.addf %6, %8 : vector<128x128xf32>
    %10 = arith.truncf %9 : vector<128x128xf32> to vector<128x128xbf16>
    %c0_10 = arith.constant 0 : index
    %c0_11 = arith.constant 0 : index
    %11 = vector.load %arg6[%c0_10, %c0_11] : memref<128x128xbf16, #tpu.memory_space<vmem>>, vector<128x128xbf16>
    tpu.vector_store %arg6[%c0_10, %c0_11], %10 {strides = array<i32>} : memref<128x128xbf16, #tpu.memory_space<vmem>>, vector<128x128xbf16>,
    return
  }
  func.func @transform_0(%arg0: i32) -> (i32, i32) {
    %c0_i32 = arith.constant 0 : i32
    %c0_i32_0 = arith.constant 0 : i32
    return %arg0, %c0_i32 : i32, i32
  }
  func.func @transform_1(%arg0: i32) -> (i32, i32) {
    %c0_i32 = arith.constant 0 : i32
    %c0_i32_0 = arith.constant 0 : i32
    %c0_i32_1 = arith.constant 0 : i32
    return %c0_i32, %c0_i32_0 : i32, i32
  }
  func.func @transform_2(%arg0: i32) -> (i32, i32) {
    %c0_i32 = arith.constant 0 : i32
    %c0_i32_0 = arith.constant 0 : i32
    %c0_i32_1 = arith.constant 0 : i32
    return %c0_i32, %c0_i32_0 : i32, i32
  }
  func.func @transform_3(%arg0: i32) -> (i32, i32) {
    %c0_i32 = arith.constant 0 : i32
    %c0_i32_0 = arith.constant 0 : i32
    %c0_i32_1 = arith.constant 0 : i32
    return %c0_i32, %c0_i32_0 : i32, i32
  }
  func.func @transform_4(%arg0: i32) -> (i32, i32) {
    %c0_i32 = arith.constant 0 : i32
    %c0_i32_0 = arith.constant 0 : i32
    return %arg0, %c0_i32 : i32, i32
  }
  func.func @transform_5(%arg0: i32) -> (i32, i32) {
    %c0_i32 = arith.constant 0 : i32
    %c0_i32_0 = arith.constant 0 : i32
    return %arg0, %c0_i32 : i32, i32
  }
}

</mosaic_0001>

<llo_original>
// kernel: tpu_custom_call.1
$region0: #{tpu_custom_call.1}
  #allocation0 [shape = 'u32[]', space=smem, size = 0x4, offset = 0x4, fixed_abs, tag = 'smem constant byte address 0x4 - core index']
  #allocation1 [shape = 'u32[144,128]{1,0:T(1,128)}', space=vmem, size = 0x12000, scoped, tag = 'internal scratch']
  %s0 = inlined_call_operand.hbm [shape: bf16[256,128], index: 0, kind: input, shape index: {}]
  %s1 = inlined_call_operand.hbm [shape: bf16[128,128], index: 1, kind: input, shape index: {}]
  %s2 = inlined_call_operand.hbm [shape: bf16[128,128], index: 2, kind: input, shape index: {}]
  %s3 = inlined_call_operand.vmem [shape: f32[1,128], index: 3, kind: input, shape index: {}]
  %s4 = inlined_call_operand.hbm [shape: bf16[256,128], index: 4, kind: output, shape index: {0}]
  %s5 = inlined_call_operand.hbm [shape: bf16[256,128], index: 5, kind: output, shape index: {1}]
  %6 = xla_tuple %s4, %s5
  %s7 = sld [smem:[#allocation0]]
  $region69: #{tpu_custom_call.1} parent=0
    _
  %s9 = ssub.s32 1, %s7
  %s10 = scalar_select 0, %s9, %s7
  $region1: #{tpu_custom_call.1} parent=0
    #allocation2 [shape = 'u8[65536]{0}', space=vmem, size = 0x10000, scoped, tag = 'input window, operand 0']
    #allocation3 [shape = 's32[2]{0}', space=sflag, size = 0x8, scoped, tag = 'scoped memory for tpu_custom_call.1']
    #allocation4 [shape = 's32[2]{0}', space=sflag, size = 0x8, scoped, tag = 'scoped memory for tpu_custom_call.1']
    #allocation5 [shape = 'u8[32768]{0}', space=vmem, size = 0x8000, scoped, tag = 'input window, operand 1, single buffered']
    #allocation6 [shape = 's32[1]{0}', space=sflag, size = 0x4, scoped, tag = 'scoped memory for tpu_custom_call.1']
    #allocation7 [shape = 'u8[32768]{0}', space=vmem, size = 0x8000, scoped, tag = 'input window, operand 2, single buffered']
    #allocation8 [shape = 'u8[65536]{0}', space=vmem, size = 0x10000, scoped, tag = 'output window, operand 0']
    #allocation9 [shape = 'u8[65536]{0}', space=vmem, size = 0x10000, scoped, tag = 'output window, operand 1']
    #allocation10 [shape = 's32[2]{0}', space=sflag, size = 0x8, scoped, tag = 'scoped memory for tpu_custom_call.1']
    %11 = vsyncpa [#allocation3], 0
    %s12 = scalar_lea.sflag [#allocation3], 1
    %13 = vsyncpa %s12, 0
    %14 = vsyncpa [#allocation6], 0
    %15 = vsyncpa [#allocation4], 0
    %s16 = scalar_lea.sflag [#allocation4], 1
    %17 = vsyncpa %s16, 0
    %18 = vsyncpa [#allocation10], 0
    %s19 = scalar_lea.sflag [#allocation10], 1
    %20 = vsyncpa %s19, 0
    loop: start=0, step=1, limit=4
    $region2: #{tpu_custom_call.1} parent=1 // loop_pre_header
      _
    $region3: #{tpu_custom_call.1} parent=1 // loop_header
      %s22 = sphi 0, %s26
      %p23 = scmp.ge.s32.totalorder %s22, 4
      %s32 = sphi 0, %s34
      %s35 = sphi 0, %s32
      %s36 = sphi 0, %s35
      %s52 = sphi 0, %s36
      %s56 = sphi 0, %s56
      %s58 = sphi 0, %s56
      %s59 = sphi 0, %s58
      %s73 = sphi 0, %s59
      %s77 = sphi 0, %s77
      %s79 = sphi 0, %s77
      %s80 = sphi 0, %s79
      %s94 = sphi 0, %s80
      %s98 = sphi 0, %s98
      %s100 = sphi 0, %s98
      %s101 = sphi 0, %s100
      %s115 = sphi 0, %s101
      %s121 = sphi 0, %s123
      %s124 = sphi 0, %s121
      %s125 = sphi 0, %s124
      %s141 = sphi 0, %s125
      %s147 = sphi 0, %s149
      %s150 = sphi 0, %s147
      %s151 = sphi 0, %s150
      %s167 = sphi 0, %s151
    $region4: #{tpu_custom_call.1} parent=1 // loop_header_branch
      %25 = sbr.rel (%p23) target = $region8
    $region5: #{tpu_custom_call.1} parent=1 // loop_body
      %s27 = ssub.s32 %s22, 1
      %s28 = ssub.s32 %s22, 2
      %s29 = sadd.s32 %s22, 1
      %s30 = ssub.s32 %s22, %s29
      %p31 = scmp.eq.s32.totalorder %s30, 0
      %s33 = sadd.s32 %s32, 1
      %s34 = scalar_select %p31, %s32, %s33
      %p37 = pneg %p31
      %p38 = scmp.eq.s32.totalorder %s22, 1
      %p39 = por %p37, %p38
      %p40 = scmp.ne.s32.totalorder %s32, %s35
      %p41 = scmp.eq.s32.totalorder %s22, 0
      %p42 = por %p40, %p41
      %p43 = scmp.ne.s32.totalorder %s32, %s35
      %p44 = scmp.eq.s32.totalorder %s27, 1
      %p45 = por %p43, %p44
      %p46 = scmp.ne.s32.totalorder %s35, %s36
      %p47 = scmp.eq.s32.totalorder %s27, 0
      %p48 = por %p46, %p47
      %p49 = scmp.ne.s32.totalorder %s35, %s36
      %p50 = scmp.eq.s32.totalorder %s28, 1
      %p51 = por %p49, %p50
      %p53 = scmp.ne.s32.totalorder %s36, %s52
      %p54 = scmp.eq.s32.totalorder %s28, 0
      %p55 = por %p53, %p54
      %s57 = sadd.s32 %s56, 1
      %p60 = scmp.eq.s32.totalorder %s22, 1
      %p61 = scmp.ne.s32.totalorder %s56, %s58
      %p62 = scmp.eq.s32.totalorder %s22, 0
      %p63 = por %p61, %p62
      %p64 = scmp.ne.s32.totalorder %s56, %s58
      %p65 = scmp.eq.s32.totalorder %s27, 1
      %p66 = por %p64, %p65
      %p67 = scmp.ne.s32.totalorder %s58, %s59
      %p68 = scmp.eq.s32.totalorder %s27, 0
      %p69 = por %p67, %p68
      %p70 = scmp.ne.s32.totalorder %s58, %s59
      %p71 = scmp.eq.s32.totalorder %s28, 1
      %p72 = por %p70, %p71
      %p74 = scmp.ne.s32.totalorder %s59, %s73
      %p75 = scmp.eq.s32.totalorder %s28, 0
      %p76 = por %p74, %p75
      %s78 = sadd.s32 %s77, 1
      %p81 = scmp.eq.s32.totalorder %s22, 1
      %p82 = scmp.ne.s32.totalorder %s77, %s79
      %p83 = scmp.eq.s32.totalorder %s22, 0
      %p84 = por %p82, %p83
      %p85 = scmp.ne.s32.totalorder %s77, %s79
      %p86 = scmp.eq.s32.totalorder %s27, 1
      %p87 = por %p85, %p86
      %p88 = scmp.ne.s32.totalorder %s79, %s80
      %p89 = scmp.eq.s32.totalorder %s27, 0
      %p90 = por %p88, %p89
      %p91 = scmp.ne.s32.totalorder %s79, %s80
      %p92 = scmp.eq.s32.totalorder %s28, 1
      %p93 = por %p91, %p92
      %p95 = scmp.ne.s32.totalorder %s80, %s94
      %p96 = scmp.eq.s32.totalorder %s28, 0
      %p97 = por %p95, %p96
      %s99 = sadd.s32 %s98, 1
      %p102 = scmp.eq.s32.totalorder %s22, 1
      %p103 = scmp.ne.s32.totalorder %s98, %s100
      %p104 = scmp.eq.s32.totalorder %s22, 0
      %p105 = por %p103, %p104
      %p106 = scmp.ne.s32.totalorder %s98, %s100
      %p107 = scmp.eq.s32.totalorder %s27, 1
      %p108 = por %p106, %p107
      %p109 = scmp.ne.s32.totalorder %s100, %s101
      %p110 = scmp.eq.s32.totalorder %s27, 0
      %p111 = por %p109, %p110
      %p112 = scmp.ne.s32.totalorder %s100, %s101
      %p113 = scmp.eq.s32.totalorder %s28, 1
      %p114 = por %p112, %p113
      %p116 = scmp.ne.s32.totalorder %s101, %s115
      %p117 = scmp.eq.s32.totalorder %s28, 0
      %p118 = por %p116, %p117
      %s119 = ssub.s32 %s22, %s29
      %p120 = scmp.eq.s32.totalorder %s119, 0
      %s122 = sadd.s32 %s121, 1
      %s123 = scalar_select %p120, %s121, %s122
      %p126 = pneg %p120
      %p127 = scmp.eq.s32.totalorder %s22, 1
      %p128 = por %p126, %p127
      %p129 = scmp.ne.s32.totalorder %s121, %s124
      %p130 = scmp.eq.s32.totalorder %s22, 0
      %p131 = por %p129, %p130
      %p132 = scmp.ne.s32.totalorder %s121, %s124
      %p133 = scmp.eq.s32.totalorder %s27, 1
      %p134 = por %p132, %p133
      %p135 = scmp.ne.s32.totalorder %s124, %s125
      %p136 = scmp.eq.s32.totalorder %s27, 0
      %p137 = por %p135, %p136
      %p138 = scmp.ne.s32.totalorder %s124, %s125
      %p139 = scmp.eq.s32.totalorder %s28, 1
      %p140 = por %p138, %p139
      %p142 = scmp.ne.s32.totalorder %s125, %s141
      %p143 = scmp.eq.s32.totalorder %s28, 0
      %p144 = por %p142, %p143
      %s145 = ssub.s32 %s22, %s29
      %p146 = scmp.eq.s32.totalorder %s145, 0
      %s148 = sadd.s32 %s147, 1
      %s149 = scalar_select %p146, %s147, %s148
      %p152 = pneg %p146
      %p153 = scmp.eq.s32.totalorder %s22, 1
      %p154 = por %p152, %p153
      %p155 = scmp.ne.s32.totalorder %s147, %s150
      %p156 = scmp.eq.s32.totalorder %s22, 0
      %p157 = por %p155, %p156
      %p158 = scmp.ne.s32.totalorder %s147, %s150
      %p159 = scmp.eq.s32.totalorder %s27, 1
      %p160 = por %p158, %p159
      %p161 = scmp.ne.s32.totalorder %s150, %s151
      %p162 = scmp.eq.s32.totalorder %s27, 0
      %p163 = por %p161, %p162
      %p164 = scmp.ne.s32.totalorder %s150, %s151
      %p165 = scmp.eq.s32.totalorder %s28, 1
      %p166 = por %p164, %p165
      %p168 = scmp.ne.s32.totalorder %s151, %s167
      %p169 = scmp.eq.s32.totalorder %s28, 0
      %p170 = por %p168, %p169
      %p171 = scmp.le.s32.totalorder 1, %s22
      %p172 = scmp.lt.s32.totalorder %s22, 3
      %p173 = pnand %p171, %p172
      %p174 = pneg %p173
      // Predicated region
      $region9: #{tpu_custom_call.1} parent=5 // pred_check
        _
      $region10: #{tpu_custom_call.1} parent=5 // pred_check_branch
        %176 = sbr.rel (%p173) target = $region12
      $region11: #{tpu_custom_call.1} parent=5 // pred_region
        %s177 = ssub.s32 %s22, 1
        // Predicated region
        $region13: #{tpu_custom_call.1} parent=11 // pred_check
          %p178 = pneg %p69
        $region14: #{tpu_custom_call.1} parent=11 // pred_check_branch
          %180 = sbr.rel (%p178) target = $region16
        $region15: #{tpu_custom_call.1} parent=11 // pred_region
          %s182 = ssub.s32 1024, 1024
          %183 = vsyncadd [#allocation6], %s182
          %s184 = sshll.u32 [#allocation5], 4
          %s185 = int_to_ptr.vmem [resolvable:$true] %s184
          %190 = dma.hbm_to_vmem [thread:$0]  %s1, 1024, %s185, [#allocation6], 64, 64, 4
        $region16: #{tpu_custom_call.1} parent=11 // pred_fallthru
          _
        // Predicated region
        $region17: #{tpu_custom_call.1} parent=11 // pred_check
          %p191 = pneg %p90
        $region18: #{tpu_custom_call.1} parent=11 // pred_check_branch
          %193 = sbr.rel (%p191) target = $region20
        $region19: #{tpu_custom_call.1} parent=11 // pred_region
          %s195 = ssub.s32 1024, 1024
          %196 = vsyncadd [#allocation6], %s195
          %s197 = sshll.u32 [#allocation7], 4
          %s198 = int_to_ptr.vmem [resolvable:$true] %s197
          %203 = dma.hbm_to_vmem [thread:$0]  %s2, 1024, %s198, [#allocation6], 64, 64, 4
        $region20: #{tpu_custom_call.1} parent=11 // pred_fallthru
          _
        // Predicated region
        $region21: #{tpu_custom_call.1} parent=11 // pred_check
          %p204 = pneg %p111
        $region22: #{tpu_custom_call.1} parent=11 // pred_check_branch
          %206 = sbr.rel (%p204) target = $region24
        $region23: #{tpu_custom_call.1} parent=11 // pred_region
          _
        $region24: #{tpu_custom_call.1} parent=11 // pred_fallthru
          _
      $region12: #{tpu_custom_call.1} parent=5 // pred_fallthru
        _
      %p207 = scmp.lt.s32.totalorder %s22, 2
      // Predicated region
      $region25: #{tpu_custom_call.1} parent=5 // pred_check
        %p208 = pneg %p207
      $region26: #{tpu_custom_call.1} parent=5 // pred_check_branch
        %210 = sbr.rel (%p208) target = $region28
      $region27: #{tpu_custom_call.1} parent=5 // pred_region
        // Predicated region
        $region29: #{tpu_custom_call.1} parent=27 // pred_check
          %p211 = pneg %p42
        $region30: #{tpu_custom_call.1} parent=27 // pred_check_branch
          %213 = sbr.rel (%p211) target = $region32
        $region31: #{tpu_custom_call.1} parent=27 // pred_region
          %s214 = sand.u32 %s32, 1
          %s215 = scalar_lea.sflag [#allocation3], %s214
          %s216 = sand.u32 %s32, 1
          %s217 = smul.addr %s216, 64
          %s218 = scalar_lea.vmem [#allocation2], %s217
          %s219 = smul.u32 16, %s22
          %s221 = ssub.s32 1024, 1024
          %222 = vsyncadd %s215, %s221
          %s223 = smul.addr %s219, 64
          %s224 = scalar_lea.hbm %s0, %s223
          %s225 = sshll.u32 %s218, 4
          %s226 = int_to_ptr.vmem [resolvable:$true] %s225
          %231 = dma.hbm_to_vmem [thread:$0]  %s224, 1024, %s226, %s215, 64, 64, 4
        $region32: #{tpu_custom_call.1} parent=27 // pred_fallthru
          _
      $region28: #{tpu_custom_call.1} parent=5 // pred_fallthru
        _
      %p232 = scmp.le.s32.totalorder 1, %s22
      %p233 = scmp.lt.s32.totalorder %s22, 3
      %p234 = pnand %p232, %p233
      %p235 = pneg %p234
      // Predicated region
      $region33: #{tpu_custom_call.1} parent=5 // pred_check
        _
      $region34: #{tpu_custom_call.1} parent=5 // pred_check_branch
        %237 = sbr.rel (%p234) target = $region36
      $region35: #{tpu_custom_call.1} parent=5 // pred_region
        %s238 = ssub.s32 %s22, 1
        %s239 = sand.u32 %s35, 1
        %s240 = scalar_lea.sflag [#allocation3], %s239
        %s241 = sand.u32 %s35, 1
        %s242 = smul.addr %s241, 64
        %s243 = scalar_lea.vmem [#allocation2], %s242
        // Predicated region
        $region37: #{tpu_custom_call.1} parent=35 // pred_check
          %p244 = pneg %p48
        $region38: #{tpu_custom_call.1} parent=35 // pred_check_branch
          %246 = sbr.rel (%p244) target = $region40
        $region39: #{tpu_custom_call.1} parent=35 // pred_region
          %247 = dma.done %s240, 1024
        $region40: #{tpu_custom_call.1} parent=35 // pred_fallthru
          _
        // Predicated region
        $region41: #{tpu_custom_call.1} parent=35 // pred_check
          %p248 = pneg %p69
        $region42: #{tpu_custom_call.1} parent=35 // pred_check_branch
          %250 = sbr.rel (%p248) target = $region44
        $region43: #{tpu_custom_call.1} parent=35 // pred_region
          %251 = dma.done [#allocation6], 1024
        $region44: #{tpu_custom_call.1} parent=35 // pred_fallthru
          _
        // Predicated region
        $region45: #{tpu_custom_call.1} parent=35 // pred_check
          %p252 = pneg %p90
        $region46: #{tpu_custom_call.1} parent=35 // pred_check_branch
          %254 = sbr.rel (%p252) target = $region48
        $region47: #{tpu_custom_call.1} parent=35 // pred_region
          %255 = dma.done [#allocation6], 1024
        $region48: #{tpu_custom_call.1} parent=35 // pred_fallthru
          _
        %s256 = sand.u32 %s35, 1
        %s257 = scalar_lea.sflag [#allocation3], %s256
        %s258 = sand.u32 %s35, 1
        %s259 = smul.addr %s258, 64
        %s260 = scalar_lea.vmem [#allocation2], %s259
        %p261 = pneg %p48
        %p262 = pneg %p45
        %p263 = pneg %p69
        %p264 = pneg %p66
        %p265 = pneg %p90
        %p266 = pneg %p87
        %p267 = pneg %p111
        %p268 = pneg %p108
        %p269 = pneg %p137
        %p270 = pneg %p134
        %s271 = sand.u32 %s124, 1
        %s272 = scalar_lea.sflag [#allocation4], %s271
        %s273 = sand.u32 %s124, 1
        %s274 = smul.addr %s273, 64
        %s275 = scalar_lea.vmem [#allocation8], %s274
        %p276 = pneg %p163
        %p277 = pneg %p160
        %s278 = sand.u32 %s150, 1
        %s279 = scalar_lea.sflag [#allocation10], %s278
        %s280 = sand.u32 %s150, 1
        %s281 = smul.addr %s280, 64
        %s282 = scalar_lea.vmem [#allocation9], %s281
        %s283 = smul.u32 16, %s27
        %s284 = smul.u32 16, %s27
        %s285 = smul.u32 16, %s27
        %v287 = vld [vmem:[%s243] sm:$0xf]
        %v288 = vld [vmem:[%s243 + $0x4] sm:$0xf]
        %v289 = vld [vmem:[%s243 + $0x8] sm:$0xf]
        %v290 = vld [vmem:[%s243 + $0xc] sm:$0xf]
        %v291 = vld [vmem:[%s243 + $0x10] sm:$0xf]
        %v292 = vld [vmem:[%s243 + $0x14] sm:$0xf]
        %v293 = vld [vmem:[%s243 + $0x18] sm:$0xf]
        %v294 = vld [vmem:[%s243 + $0x1c] sm:$0xf]
        %v295 = vld [vmem:[%s243 + $0x20] sm:$0xf]
        %v296 = vld [vmem:[%s243 + $0x24] sm:$0xf]
        %v297 = vld [vmem:[%s243 + $0x28] sm:$0xf]
        %v298 = vld [vmem:[%s243 + $0x2c] sm:$0xf]
        %v299 = vld [vmem:[%s243 + $0x30] sm:$0xf]
        %v300 = vld [vmem:[%s243 + $0x34] sm:$0xf]
        %v301 = vld [vmem:[%s243 + $0x38] sm:$0xf]
        %v302 = vld [vmem:[%s243 + $0x3c] sm:$0xf]
        %v303 = vld [vmem:[#allocation5] sm:$0xf]
        %v304 = vld [vmem:[#allocation5 + $0x4] sm:$0xf]
        %v305 = vld [vmem:[#allocation5 + $0x8] sm:$0xf]
        %v306 = vld [vmem:[#allocation5 + $0xc] sm:$0xf]
        %v307 = vld [vmem:[#allocation5 + $0x10] sm:$0xf]
        %v308 = vld [vmem:[#allocation5 + $0x14] sm:$0xf]
        %v309 = vld [vmem:[#allocation5 + $0x18] sm:$0xf]
        %v310 = vld [vmem:[#allocation5 + $0x1c] sm:$0xf]
        %v311 = vld [vmem:[#allocation5 + $0x20] sm:$0xf]
        %v312 = vld [vmem:[#allocation5 + $0x24] sm:$0xf]
        %v313 = vld [vmem:[#allocation5 + $0x28] sm:$0xf]
        %v314 = vld [vmem:[#allocation5 + $0x2c] sm:$0xf]
        %v315 = vld [vmem:[#allocation5 + $0x30] sm:$0xf]
        %v316 = vld [vmem:[#allocation5 + $0x34] sm:$0xf]
        %v317 = vld [vmem:[#allocation5 + $0x38] sm:$0xf]
        %v318 = vld [vmem:[#allocation5 + $0x3c] sm:$0xf]
        %v335 = vunpack.c.l.b16 %v287
        %v336 = vunpack.c.l.b16 %v288
        %v337 = vunpack.c.l.b16 %v289
        %v338 = vunpack.c.l.b16 %v290
        %v339 = vunpack.c.l.b16 %v291
        %v340 = vunpack.c.l.b16 %v292
        %v341 = vunpack.c.l.b16 %v293
        %v342 = vunpack.c.l.b16 %v294
        %v343 = vunpack.c.l.b16 %v295
        %v344 = vunpack.c.l.b16 %v296
        %v345 = vunpack.c.l.b16 %v297
        %v346 = vunpack.c.l.b16 %v298
        %v347 = vunpack.c.l.b16 %v299
        %v348 = vunpack.c.l.b16 %v300
        %v349 = vunpack.c.l.b16 %v301
        %v350 = vunpack.c.l.b16 %v302
        %v351 = vpack.c.b16 %v336, %v335
        %v352 = vpack.c.b16 %v338, %v337
        %v353 = vpack.c.b16 %v340, %v339
        %v354 = vpack.c.b16 %v342, %v341
        %v355 = vpack.c.b16 %v344, %v343
        %v356 = vpack.c.b16 %v346, %v345
        %v357 = vpack.c.b16 %v348, %v347
        %v358 = vpack.c.b16 %v350, %v349
        %v383 = vunpack.c.l.b16 %v303
        %v384 = vunpack.c.l.b16 %v304
        %v385 = vunpack.c.l.b16 %v305
        %v386 = vunpack.c.l.b16 %v306
        %v387 = vunpack.c.l.b16 %v307
        %v388 = vunpack.c.l.b16 %v308
        %v389 = vunpack.c.l.b16 %v309
        %v390 = vunpack.c.l.b16 %v310
        %v391 = vunpack.c.l.b16 %v311
        %v392 = vunpack.c.l.b16 %v312
        %v393 = vunpack.c.l.b16 %v313
        %v394 = vunpack.c.l.b16 %v314
        %v395 = vunpack.c.l.b16 %v315
        %v396 = vunpack.c.l.b16 %v316
        %v397 = vunpack.c.l.b16 %v317
        %v398 = vunpack.c.l.b16 %v318
        %v399 = vpack.c.b16 %v384, %v383
        %v400 = vpack.c.b16 %v386, %v385
        %v401 = vpack.c.b16 %v388, %v387
        %v402 = vpack.c.b16 %v390, %v389
        %v403 = vpack.c.b16 %v392, %v391
        %v404 = vpack.c.b16 %v394, %v393
        %v405 = vpack.c.b16 %v396, %v395
        %v406 = vpack.c.b16 %v398, %v397
        %415 = vmatprep.subr.bf16.mxu0 0
        %416 = vmatpush1.bf16.msra.mxu0 %v406
        %417 = vmatprep.subr.bf16.mxu0 0
        %418 = vmatpush1.bf16.msra.mxu0 %v405
        %419 = vmatprep.subr.bf16.mxu0 0
        %420 = vmatpush1.bf16.msra.mxu0 %v404
        %421 = vmatprep.subr.bf16.mxu0 0
        %422 = vmatpush1.bf16.msra.mxu0 %v403
        %423 = vmatprep.subr.bf16.mxu0 0
        %424 = vmatpush1.bf16.msra.mxu0 %v402
        %425 = vmatprep.subr.bf16.mxu0 0
        %426 = vmatpush1.bf16.msra.mxu0 %v401
        %427 = vmatprep.subr.bf16.mxu0 0
        %428 = vmatpush1.bf16.msra.mxu0 %v400
        %429 = vmatprep.subr.bf16.mxu0 0
        %430 = vmatpush1.bf16.msra.mxu0 %v399
        %431 = vmatprep.subr.bf16.mxu0 0
        %432 = vmatpush2.bf16.msra.mxu0 0
        %433 = vmatprep.subr.bf16.mxu0 0
        %434 = vmatpush2.bf16.msra.mxu0 0
        %435 = vmatprep.subr.bf16.mxu0 0
        %436 = vmatpush2.bf16.msra.mxu0 0
        %437 = vmatprep.subr.bf16.mxu0 0
        %438 = vmatpush2.bf16.msra.mxu0 0
        %439 = vmatprep.subr.bf16.mxu0 0
        %440 = vmatpush2.bf16.msra.mxu0 0
        %441 = vmatprep.subr.bf16.mxu0 0
        %442 = vmatpush2.bf16.msra.mxu0 0
        %443 = vmatprep.subr.bf16.mxu0 0
        %444 = vmatpush2.bf16.msra.mxu0 0
        %445 = vmatprep.subr.bf16.mxu0 0
        %446 = vmatpush2.bf16.msra.mxu0 0
        %447 = vmatprep.mubr.bf16.mxu0 0
        %448 = vmatmul.mubr.bf16.gmra.mxu0 %v351
        %v449 = vpop.f32.mrf.mxu0
        %v450 = vadd.f32 0.0, %v449
        %v451 = vpop.f32.mrf.mxu0
        %v452 = vpop.f32.mrf.mxu0
        %v453 = vadd.f32 0.0, %v452
        %v454 = vpop.f32.mrf.mxu0
        %455 = vmatprep.mubr.bf16.mxu0 0
        %456 = vmatmul.mubr.bf16.gmra.mxu0 %v352
        %v457 = vpop.f32.mrf.mxu0
        %v458 = vadd.f32 0.0, %v457
        %v459 = vpop.f32.mrf.mxu0
        %v460 = vpop.f32.mrf.mxu0
        %v461 = vadd.f32 0.0, %v460
        %v462 = vpop.f32.mrf.mxu0
        %463 = vmatprep.mubr.bf16.mxu0 0
        %464 = vmatmul.mubr.bf16.gmra.mxu0 %v353
        %v465 = vpop.f32.mrf.mxu0
        %v466 = vadd.f32 0.0, %v465
        %v467 = vpop.f32.mrf.mxu0
        %v468 = vpop.f32.mrf.mxu0
        %v469 = vadd.f32 0.0, %v468
        %v470 = vpop.f32.mrf.mxu0
        %471 = vmatprep.mubr.bf16.mxu0 0
        %472 = vmatmul.mubr.bf16.gmra.mxu0 %v354
        %v473 = vpop.f32.mrf.mxu0
        %v474 = vadd.f32 0.0, %v473
        %v475 = vpop.f32.mrf.mxu0
        %v476 = vpop.f32.mrf.mxu0
        %v477 = vadd.f32 0.0, %v476
        %v478 = vpop.f32.mrf.mxu0
        %479 = vmatprep.mubr.bf16.mxu0 0
        %480 = vmatmul.mubr.bf16.gmra.mxu0 %v355
        %v481 = vpop.f32.mrf.mxu0
        %v482 = vadd.f32 0.0, %v481
        %v483 = vpop.f32.mrf.mxu0
        %v484 = vpop.f32.mrf.mxu0
        %v485 = vadd.f32 0.0, %v484
        %v486 = vpop.f32.mrf.mxu0
        %487 = vmatprep.mubr.bf16.mxu0 0
        %488 = vmatmul.mubr.bf16.gmra.mxu0 %v356
        %v489 = vpop.f32.mrf.mxu0
        %v490 = vadd.f32 0.0, %v489
        %v491 = vpop.f32.mrf.mxu0
        %v492 = vpop.f32.mrf.mxu0
        %v493 = vadd.f32 0.0, %v492
        %v494 = vpop.f32.mrf.mxu0
        %495 = vmatprep.mubr.bf16.mxu0 0
        %496 = vmatmul.mubr.bf16.gmra.mxu0 %v357
        %v497 = vpop.f32.mrf.mxu0
        %v498 = vadd.f32 0.0, %v497
        %v499 = vpop.f32.mrf.mxu0
        %v500 = vpop.f32.mrf.mxu0
        %v501 = vadd.f32 0.0, %v500
        %v502 = vpop.f32.mrf.mxu0
        %503 = vmatprep.mubr.bf16.mxu0 0
        %504 = vmatmul.mubr.bf16.gmra.mxu0 %v358
        %v505 = vpop.f32.mrf.mxu0
        %v506 = vadd.f32 0.0, %v505
        %v507 = vpop.f32.mrf.mxu0
        %v508 = vpop.f32.mrf.mxu0
        %v509 = vadd.f32 0.0, %v508
        %v510 = vpop.f32.mrf.mxu0
        %511 = vdwg.mxu0
        %v512 = vpack.c.bf16 %v453, %v450
        %v513 = vpack.c.bf16 %v461, %v458
        %v514 = vpack.c.bf16 %v469, %v466
        %v515 = vpack.c.bf16 %v477, %v474
        %v516 = vpack.c.bf16 %v485, %v482
        %v517 = vpack.c.bf16 %v493, %v490
        %v518 = vpack.c.bf16 %v501, %v498
        %v519 = vpack.c.bf16 %v509, %v506
        %v528 = vunpack.c.l.b16 %v512
        %v529 = vunpack.c.h.b16 %v512
        %v530 = vunpack.c.l.b16 %v513
        %v531 = vunpack.c.h.b16 %v513
        %v532 = vunpack.c.l.b16 %v514
        %v533 = vunpack.c.h.b16 %v514
        %v534 = vunpack.c.l.b16 %v515
        %v535 = vunpack.c.h.b16 %v515
        %v536 = vunpack.c.l.b16 %v516
        %v537 = vunpack.c.h.b16 %v516
        %v538 = vunpack.c.l.b16 %v517
        %v539 = vunpack.c.h.b16 %v517
        %v540 = vunpack.c.l.b16 %v518
        %v541 = vunpack.c.h.b16 %v518
        %v542 = vunpack.c.l.b16 %v519
        %v543 = vunpack.c.h.b16 %v519
        %v544 = vpack.c.b16 %v528, %v528
        %v545 = vpack.c.b16 %v529, %v529
        %v546 = vpack.c.b16 %v530, %v530
        %v547 = vpack.c.b16 %v531, %v531
        %v548 = vpack.c.b16 %v532, %v532
        %v549 = vpack.c.b16 %v533, %v533
        %v550 = vpack.c.b16 %v534, %v534
        %v551 = vpack.c.b16 %v535, %v535
        %v552 = vpack.c.b16 %v536, %v536
        %v553 = vpack.c.b16 %v537, %v537
        %v554 = vpack.c.b16 %v538, %v538
        %v555 = vpack.c.b16 %v539, %v539
        %v556 = vpack.c.b16 %v540, %v540
        %v557 = vpack.c.b16 %v541, %v541
        %v558 = vpack.c.b16 %v542, %v542
        %v559 = vpack.c.b16 %v543, %v543
        %576 = vst [vmem:[%s275] sm:$0xf] %v544
        %577 = vst [vmem:[%s275 + $0x4] sm:$0xf] %v545
        %578 = vst [vmem:[%s275 + $0x8] sm:$0xf] %v546
        %579 = vst [vmem:[%s275 + $0xc] sm:$0xf] %v547
        %580 = vst [vmem:[%s275 + $0x10] sm:$0xf] %v548
        %581 = vst [vmem:[%s275 + $0x14] sm:$0xf] %v549
        %582 = vst [vmem:[%s275 + $0x18] sm:$0xf] %v550
        %583 = vst [vmem:[%s275 + $0x1c] sm:$0xf] %v551
        %584 = vst [vmem:[%s275 + $0x20] sm:$0xf] %v552
        %585 = vst [vmem:[%s275 + $0x24] sm:$0xf] %v553
        %586 = vst [vmem:[%s275 + $0x28] sm:$0xf] %v554
        %587 = vst [vmem:[%s275 + $0x2c] sm:$0xf] %v555
        %588 = vst [vmem:[%s275 + $0x30] sm:$0xf] %v556
        %589 = vst [vmem:[%s275 + $0x34] sm:$0xf] %v557
        %590 = vst [vmem:[%s275 + $0x38] sm:$0xf] %v558
        %591 = vst [vmem:[%s275 + $0x3c] sm:$0xf] %v559
        %v592 = vld [vmem:[#allocation7] sm:$0xf]
        %v593 = vld [vmem:[#allocation7 + $0x4] sm:$0xf]
        %v594 = vld [vmem:[#allocation7 + $0x8] sm:$0xf]
        %v595 = vld [vmem:[#allocation7 + $0xc] sm:$0xf]
        %v596 = vld [vmem:[#allocation7 + $0x10] sm:$0xf]
        %v597 = vld [vmem:[#allocation7 + $0x14] sm:$0xf]
        %v598 = vld [vmem:[#allocation7 + $0x18] sm:$0xf]
        %v599 = vld [vmem:[#allocation7 + $0x1c] sm:$0xf]
        %v600 = vld [vmem:[#allocation7 + $0x20] sm:$0xf]
        %v601 = vld [vmem:[#allocation7 + $0x24] sm:$0xf]
        %v602 = vld [vmem:[#allocation7 + $0x28] sm:$0xf]
        %v603 = vld [vmem:[#allocation7 + $0x2c] sm:$0xf]
        %v604 = vld [vmem:[#allocation7 + $0x30] sm:$0xf]
        %v605 = vld [vmem:[#allocation7 + $0x34] sm:$0xf]
        %v606 = vld [vmem:[#allocation7 + $0x38] sm:$0xf]
        %v607 = vld [vmem:[#allocation7 + $0x3c] sm:$0xf]
        %v608 = vld [vmem:[%s3] sm:$0x1]
        %v610 = vlaneseq
        %v611 = vshrl.u32 %v610, 7
        %v612 = vsub.s32 0, %v611
        %v613 = vrot.slane %v608, %v612
        %v631 = vunpack.c.l.b16 %v592
        %v632 = vunpack.c.l.b16 %v593
        %v633 = vunpack.c.l.b16 %v594
        %v634 = vunpack.c.l.b16 %v595
        %v635 = vunpack.c.l.b16 %v596
        %v636 = vunpack.c.l.b16 %v597
        %v637 = vunpack.c.l.b16 %v598
        %v638 = vunpack.c.l.b16 %v599
        %v639 = vunpack.c.l.b16 %v600
        %v640 = vunpack.c.l.b16 %v601
        %v641 = vunpack.c.l.b16 %v602
        %v642 = vunpack.c.l.b16 %v603
        %v643 = vunpack.c.l.b16 %v604
        %v644 = vunpack.c.l.b16 %v605
        %v645 = vunpack.c.l.b16 %v606
        %v646 = vunpack.c.l.b16 %v607
        %v647 = vpack.c.b16 %v632, %v631
        %v648 = vpack.c.b16 %v634, %v633
        %v649 = vpack.c.b16 %v636, %v635
        %v650 = vpack.c.b16 %v638, %v637
        %v651 = vpack.c.b16 %v640, %v639
        %v652 = vpack.c.b16 %v642, %v641
        %v653 = vpack.c.b16 %v644, %v643
        %v654 = vpack.c.b16 %v646, %v645
        %663 = vmatprep.subr.bf16.mxu0 0
        %664 = vmatpush1.bf16.msra.mxu0 %v654
        %665 = vmatprep.subr.bf16.mxu0 0
        %666 = vmatpush1.bf16.msra.mxu0 %v653
        %667 = vmatprep.subr.bf16.mxu0 0
        %668 = vmatpush1.bf16.msra.mxu0 %v652
        %669 = vmatprep.subr.bf16.mxu0 0
        %670 = vmatpush1.bf16.msra.mxu0 %v651
        %671 = vmatprep.subr.bf16.mxu0 0
        %672 = vmatpush1.bf16.msra.mxu0 %v650
        %673 = vmatprep.subr.bf16.mxu0 0
        %674 = vmatpush1.bf16.msra.mxu0 %v649
        %675 = vmatprep.subr.bf16.mxu0 0
        %676 = vmatpush1.bf16.msra.mxu0 %v648
        %677 = vmatprep.subr.bf16.mxu0 0
        %678 = vmatpush1.bf16.msra.mxu0 %v647
        %679 = vmatprep.subr.bf16.mxu0 0
        %680 = vmatpush2.bf16.msra.mxu0 0
        %681 = vmatprep.subr.bf16.mxu0 0
        %682 = vmatpush2.bf16.msra.mxu0 0
        %683 = vmatprep.subr.bf16.mxu0 0
        %684 = vmatpush2.bf16.msra.mxu0 0
        %685 = vmatprep.subr.bf16.mxu0 0
        %686 = vmatpush2.bf16.msra.mxu0 0
        %687 = vmatprep.subr.bf16.mxu0 0
        %688 = vmatpush2.bf16.msra.mxu0 0
        %689 = vmatprep.subr.bf16.mxu0 0
        %690 = vmatpush2.bf16.msra.mxu0 0
        %691 = vmatprep.subr.bf16.mxu0 0
        %692 = vmatpush2.bf16.msra.mxu0 0
        %693 = vmatprep.subr.bf16.mxu0 0
        %694 = vmatpush2.bf16.msra.mxu0 0
        %695 = vmatprep.mubr.bf16.mxu0 0
        %696 = vmatmul.mubr.bf16.gmra.mxu0 %v351
        %v697 = vpop.f32.mrf.mxu0
        %v698 = vadd.f32 %v613, %v697
        %v699 = vpop.f32.mrf.mxu0
        %v700 = vpop.f32.mrf.mxu0
        %v701 = vadd.f32 %v613, %v700
        %v702 = vpop.f32.mrf.mxu0
        %703 = vmatprep.mubr.bf16.mxu0 0
        %704 = vmatmul.mubr.bf16.gmra.mxu0 %v352
        %v705 = vpop.f32.mrf.mxu0
        %v706 = vadd.f32 %v613, %v705
        %v707 = vpop.f32.mrf.mxu0
        %v708 = vpop.f32.mrf.mxu0
        %v709 = vadd.f32 %v613, %v708
        %v710 = vpop.f32.mrf.mxu0
        %711 = vmatprep.mubr.bf16.mxu0 0
        %712 = vmatmul.mubr.bf16.gmra.mxu0 %v353
        %v713 = vpop.f32.mrf.mxu0
        %v714 = vadd.f32 %v613, %v713
        %v715 = vpop.f32.mrf.mxu0
        %v716 = vpop.f32.mrf.mxu0
        %v717 = vadd.f32 %v613, %v716
        %v718 = vpop.f32.mrf.mxu0
        %719 = vmatprep.mubr.bf16.mxu0 0
        %720 = vmatmul.mubr.bf16.gmra.mxu0 %v354
        %v721 = vpop.f32.mrf.mxu0
        %v722 = vadd.f32 %v613, %v721
        %v723 = vpop.f32.mrf.mxu0
        %v724 = vpop.f32.mrf.mxu0
        %v725 = vadd.f32 %v613, %v724
        %v726 = vpop.f32.mrf.mxu0
        %727 = vmatprep.mubr.bf16.mxu0 0
        %728 = vmatmul.mubr.bf16.gmra.mxu0 %v355
        %v729 = vpop.f32.mrf.mxu0
        %v730 = vadd.f32 %v613, %v729
        %v731 = vpop.f32.mrf.mxu0
        %v732 = vpop.f32.mrf.mxu0
        %v733 = vadd.f32 %v613, %v732
        %v734 = vpop.f32.mrf.mxu0
        %735 = vmatprep.mubr.bf16.mxu0 0
        %736 = vmatmul.mubr.bf16.gmra.mxu0 %v356
        %v737 = vpop.f32.mrf.mxu0
        %v738 = vadd.f32 %v613, %v737
        %v739 = vpop.f32.mrf.mxu0
        %v740 = vpop.f32.mrf.mxu0
        %v741 = vadd.f32 %v613, %v740
        %v742 = vpop.f32.mrf.mxu0
        %743 = vmatprep.mubr.bf16.mxu0 0
        %744 = vmatmul.mubr.bf16.gmra.mxu0 %v357
        %v745 = vpop.f32.mrf.mxu0
        %v746 = vadd.f32 %v613, %v745
        %v747 = vpop.f32.mrf.mxu0
        %v748 = vpop.f32.mrf.mxu0
        %v749 = vadd.f32 %v613, %v748
        %v750 = vpop.f32.mrf.mxu0
        %751 = vmatprep.mubr.bf16.mxu0 0
        %752 = vmatmul.mubr.bf16.gmra.mxu0 %v358
        %v753 = vpop.f32.mrf.mxu0
        %v754 = vadd.f32 %v613, %v753
        %v755 = vpop.f32.mrf.mxu0
        %v756 = vpop.f32.mrf.mxu0
        %v757 = vadd.f32 %v613, %v756
        %v758 = vpop.f32.mrf.mxu0
        %759 = vdwg.mxu0
        %v760 = vpack.c.bf16 %v701, %v698
        %v761 = vpack.c.bf16 %v709, %v706
        %v762 = vpack.c.bf16 %v717, %v714
        %v763 = vpack.c.bf16 %v725, %v722
        %v764 = vpack.c.bf16 %v733, %v730
        %v765 = vpack.c.bf16 %v741, %v738
        %v766 = vpack.c.bf16 %v749, %v746
        %v767 = vpack.c.bf16 %v757, %v754
        %v776 = vunpack.c.l.b16 %v760
        %v777 = vunpack.c.h.b16 %v760
        %v778 = vunpack.c.l.b16 %v761
        %v779 = vunpack.c.h.b16 %v761
        %v780 = vunpack.c.l.b16 %v762
        %v781 = vunpack.c.h.b16 %v762
        %v782 = vunpack.c.l.b16 %v763
        %v783 = vunpack.c.h.b16 %v763
        %v784 = vunpack.c.l.b16 %v764
        %v785 = vunpack.c.h.b16 %v764
        %v786 = vunpack.c.l.b16 %v765
        %v787 = vunpack.c.h.b16 %v765
        %v788 = vunpack.c.l.b16 %v766
        %v789 = vunpack.c.h.b16 %v766
        %v790 = vunpack.c.l.b16 %v767
        %v791 = vunpack.c.h.b16 %v767
        %v792 = vpack.c.b16 %v776, %v776
        %v793 = vpack.c.b16 %v777, %v777
        %v794 = vpack.c.b16 %v778, %v778
        %v795 = vpack.c.b16 %v779, %v779
        %v796 = vpack.c.b16 %v780, %v780
        %v797 = vpack.c.b16 %v781, %v781
        %v798 = vpack.c.b16 %v782, %v782
        %v799 = vpack.c.b16 %v783, %v783
        %v800 = vpack.c.b16 %v784, %v784
        %v801 = vpack.c.b16 %v785, %v785
        %v802 = vpack.c.b16 %v786, %v786
        %v803 = vpack.c.b16 %v787, %v787
        %v804 = vpack.c.b16 %v788, %v788
        %v805 = vpack.c.b16 %v789, %v789
        %v806 = vpack.c.b16 %v790, %v790
        %v807 = vpack.c.b16 %v791, %v791
        %824 = vst [vmem:[%s282] sm:$0xf] %v792
        %825 = vst [vmem:[%s282 + $0x4] sm:$0xf] %v793
        %826 = vst [vmem:[%s282 + $0x8] sm:$0xf] %v794
        %827 = vst [vmem:[%s282 + $0xc] sm:$0xf] %v795
        %828 = vst [vmem:[%s282 + $0x10] sm:$0xf] %v796
        %829 = vst [vmem:[%s282 + $0x14] sm:$0xf] %v797
        %830 = vst [vmem:[%s282 + $0x18] sm:$0xf] %v798
        %831 = vst [vmem:[%s282 + $0x1c] sm:$0xf] %v799
        %832 = vst [vmem:[%s282 + $0x20] sm:$0xf] %v800
        %833 = vst [vmem:[%s282 + $0x24] sm:$0xf] %v801
        %834 = vst [vmem:[%s282 + $0x28] sm:$0xf] %v802
        %835 = vst [vmem:[%s282 + $0x2c] sm:$0xf] %v803
        %836 = vst [vmem:[%s282 + $0x30] sm:$0xf] %v804
        %837 = vst [vmem:[%s282 + $0x34] sm:$0xf] %v805
        %838 = vst [vmem:[%s282 + $0x38] sm:$0xf] %v806
        %839 = vst [vmem:[%s282 + $0x3c] sm:$0xf] %v807
        %s840 = sand.u32 %s124, 1
        %s841 = scalar_lea.sflag [#allocation4], %s840
        %s842 = sand.u32 %s124, 1
        %s843 = smul.addr %s842, 64
        %s844 = scalar_lea.vmem [#allocation8], %s843
        %s845 = sand.u32 %s150, 1
        %s846 = scalar_lea.sflag [#allocation10], %s845
        %s847 = sand.u32 %s150, 1
        %s848 = smul.addr %s847, 64
        %s849 = scalar_lea.vmem [#allocation9], %s848
        // Predicated region
        $region49: #{tpu_custom_call.1} parent=35 // pred_check
          %p850 = pneg %p134
        $region50: #{tpu_custom_call.1} parent=35 // pred_check_branch
          %852 = sbr.rel (%p850) target = $region52
        $region51: #{tpu_custom_call.1} parent=35 // pred_region
          %s853 = smul.u32 16, %s27
          %s855 = ssub.s32 1024, 1024
          %856 = vsyncadd %s841, %s855
          %s857 = smul.addr %s853, 64
          %s858 = scalar_lea.hbm %s4, %s857
          %s859 = sshll.u32 %s844, 4
          %s860 = int_to_ptr.vmem [resolvable:$true] %s859
          %865 = dma.vmem_to_hbm [thread:$0]  %s860, 1024, %s858, %s841, 64, 64, 4
        $region52: #{tpu_custom_call.1} parent=35 // pred_fallthru
          _
        // Predicated region
        $region53: #{tpu_custom_call.1} parent=35 // pred_check
          %p866 = pneg %p160
        $region54: #{tpu_custom_call.1} parent=35 // pred_check_branch
          %868 = sbr.rel (%p866) target = $region56
        $region55: #{tpu_custom_call.1} parent=35 // pred_region
          %s869 = smul.u32 16, %s27
          %s871 = ssub.s32 1024, 1024
          %872 = vsyncadd %s846, %s871
          %s873 = smul.addr %s869, 64
          %s874 = scalar_lea.hbm %s5, %s873
          %s875 = sshll.u32 %s849, 4
          %s876 = int_to_ptr.vmem [resolvable:$true] %s875
          %881 = dma.vmem_to_hbm [thread:$0]  %s876, 1024, %s874, %s846, 64, 64, 4
        $region56: #{tpu_custom_call.1} parent=35 // pred_fallthru
          _
      $region36: #{tpu_custom_call.1} parent=5 // pred_fallthru
        _
      %p882 = scmp.le.s32.totalorder 2, %s22
      // Predicated region
      $region57: #{tpu_custom_call.1} parent=5 // pred_check
        %p883 = pneg %p882
      $region58: #{tpu_custom_call.1} parent=5 // pred_check_branch
        %885 = sbr.rel (%p883) target = $region60
      $region59: #{tpu_custom_call.1} parent=5 // pred_region
        %s886 = ssub.s32 %s22, 2
        // Predicated region
        $region61: #{tpu_custom_call.1} parent=59 // pred_check
          %p887 = pneg %p140
        $region62: #{tpu_custom_call.1} parent=59 // pred_check_branch
          %889 = sbr.rel (%p887) target = $region64
        $region63: #{tpu_custom_call.1} parent=59 // pred_region
          %s890 = sand.u32 %s125, 1
          %s891 = scalar_lea.sflag [#allocation4], %s890
          %s892 = sand.u32 %s125, 1
          %s893 = smul.addr %s892, 64
          %s894 = scalar_lea.vmem [#allocation8], %s893
          %895 = dma.done %s891, 1024
        $region64: #{tpu_custom_call.1} parent=59 // pred_fallthru
          _
        // Predicated region
        $region65: #{tpu_custom_call.1} parent=59 // pred_check
          %p896 = pneg %p166
        $region66: #{tpu_custom_call.1} parent=59 // pred_check_branch
          %898 = sbr.rel (%p896) target = $region68
        $region67: #{tpu_custom_call.1} parent=59 // pred_region
          %s899 = sand.u32 %s151, 1
          %s900 = scalar_lea.sflag [#allocation10], %s899
          %s901 = sand.u32 %s151, 1
          %s902 = smul.addr %s901, 64
          %s903 = scalar_lea.vmem [#allocation9], %s902
          %904 = dma.done %s900, 1024
        $region68: #{tpu_custom_call.1} parent=59 // pred_fallthru
          _
      $region60: #{tpu_custom_call.1} parent=5 // pred_fallthru
        _
    $region6: #{tpu_custom_call.1} parent=1 // loop_footer
      %s26 = sadd.s32 1, %s22
    $region7: #{tpu_custom_call.1} parent=1 // loop_footer_branch
      %21 = sbr.rel target = $region3
    $region8: #{tpu_custom_call.1} parent=1 // loop_exit
      _
    %905 = vsyncpa [#allocation3], 1
    %s906 = scalar_lea.sflag [#allocation3], 1
    %907 = vsyncpa %s906, 1
    %908 = vsyncpa [#allocation6], 1
    %909 = vsyncpa [#allocation4], 1
    %s910 = scalar_lea.sflag [#allocation4], 1
    %911 = vsyncpa %s910, 1
    %912 = vsyncpa [#allocation10], 1
    %s913 = scalar_lea.sflag [#allocation10], 1
    %914 = vsyncpa %s913, 1

</llo_original>
